<compile_context>
chip_gen: v7x
topology: tpu7x:2x2x1
jax: 0.10.0
libtpu: 0.0.40
codegen_flags: <defaults>
</compile_context>

<pallas_src>
import functools

import numpy as np
import jax
import jax.numpy as jnp
from jax import lax
from jax.experimental import pallas as pl
from jax.experimental.pallas import tpu as pltpu


# ---------------------------------------------------------------------------
# Pallas kernels
# ---------------------------------------------------------------------------
def _mm_bias_act_oneshot_kernel(x_ref, w_ref, b_ref, o_ref, *, negative_slope):
    """Single-K-step path: (TM,K)bf16 @ (K,TN)bf16 -> f32, bias+LeakyReLU, store."""
    acc = jnp.dot(x_ref[...], w_ref[...], preferred_element_type=jnp.float32)
    acc = acc + b_ref[...]                              # (1, TN) broadcast over rows
    if negative_slope is not None:
        acc = jnp.where(acc >= 0.0, acc, negative_slope * acc)
    o_ref[...] = acc.astype(o_ref.dtype)


def _mm_bias_act_reduce_kernel(x_ref, w_ref, b_ref, o_ref, acc_ref, *, negative_slope):
    """(TM,TK)bf16 @ (TK,TN)bf16 accumulated in f32; bias+LeakyReLU at finalize."""
    @pl.when(pl.program_id(2) == 0)
    def _init():
        acc_ref[...] = jnp.zeros_like(acc_ref)

    acc_ref[...] += jnp.dot(x_ref[...], w_ref[...],
                            preferred_element_type=jnp.float32)

    @pl.when(pl.program_id(2) == pl.num_programs(2) - 1)
    def _finalize():
        acc = acc_ref[...] + b_ref[...]
        if negative_slope is not None:
            acc = jnp.where(acc >= 0.0, acc, negative_slope * acc)
        o_ref[...] = acc.astype(o_ref.dtype)


def _round_up(x, m):
    return (x + m - 1) // m * m


def _matmul_bias_act(patches, w_packed, b_packed, negative_slope):
    """patches:(M,K) -> (M, N_pad) f32, using pre-packed (K_pad,N_pad) bf16 weight."""
    M, K = patches.shape
    K_pad, N_pad = w_packed.shape

    # Row tiling: one big row tile when small (min per-step overhead), else 512.
    if M <= 1024:
        M_pad = _round_up(M, 8)
        TM = M_pad
    else:
        TM = 512
        M_pad = _round_up(M, TM)
    # Column tiling: lane-dense; 256 matches the v6e/v7x MXU column width.
    TN = 256 if N_pad % 256 == 0 else 128
    # K tiling: single step whenever possible.
    if K_pad <= 512:
        TK = K_pad
    else:
        TK = 512 if K_pad % 512 == 0 else (256 if K_pad % 256 == 0 else 128)

    x = jnp.pad(patches, ((0, M_pad - M), (0, K_pad - K))).astype(jnp.bfloat16)

    cost = pl.CostEstimate(
        flops=2 * M_pad * K_pad * N_pad,
        transcendentals=0,
        bytes_accessed=(M_pad * K_pad + K_pad * N_pad) * 2 + M_pad * N_pad * 4,
    )

    if K_pad == TK:
        # ---------------- fast path: no K reduction grid ----------------
        kern = functools.partial(_mm_bias_act_oneshot_kernel,
                                 negative_slope=negative_slope)
        out = pl.pallas_call(
            kern,
            out_shape=jax.ShapeDtypeStruct((M_pad, N_pad), jnp.float32),
            grid_spec=pltpu.PrefetchScalarGridSpec(
                num_scalar_prefetch=0,
                grid=(M_pad // TM, N_pad // TN),
                in_specs=[
                    pl.BlockSpec((TM, K_pad), lambda i, j: (i, 0)),
                    pl.BlockSpec((K_pad, TN), lambda i, j: (0, j)),
                    pl.BlockSpec((1, TN), lambda i, j: (0, j)),
                ],
                out_specs=pl.BlockSpec((TM, TN), lambda i, j: (i, j)),
            ),
            compiler_params=pltpu.CompilerParams(
                dimension_semantics=("parallel", "parallel")),
            cost_estimate=cost,
        )(x, w_packed, b_packed)
    else:
        # ---------------- general path: K reduction with accumulator ----
        kern = functools.partial(_mm_bias_act_reduce_kernel,
                                 negative_slope=negative_slope)
        out = pl.pallas_call(
            kern,
            out_shape=jax.ShapeDtypeStruct((M_pad, N_pad), jnp.float32),
            grid_spec=pltpu.PrefetchScalarGridSpec(
                num_scalar_prefetch=0,
                grid=(M_pad // TM, N_pad // TN, K_pad // TK),
                in_specs=[
                    pl.BlockSpec((TM, TK), lambda i, j, k: (i, k)),
                    pl.BlockSpec((TK, TN), lambda i, j, k: (k, j)),
                    pl.BlockSpec((1, TN), lambda i, j, k: (0, j)),
                ],
                out_specs=pl.BlockSpec((TM, TN), lambda i, j, k: (i, j)),
                scratch_shapes=[pltpu.VMEM((TM, TN), jnp.float32)],
            ),
            compiler_params=pltpu.CompilerParams(
                dimension_semantics=("parallel", "parallel", "arbitrary")),
            cost_estimate=cost,
        )(x, w_packed, b_packed)
    return out[:M, :]


# ---------------------------------------------------------------------------
# Conv layer wrapper: im2col glue (XLA) + fused Pallas matmul
# ---------------------------------------------------------------------------
def conv2d_pallas(x_nhwc, op):
    k, s, p = op["k"], op["s"], op["p"]
    cin, conv_cout = op["cin"], op["conv_cout"]
    N, H, W, C = x_nhwc.shape
    assert C == cin
    Ho = (H + 2 * p - k) // s + 1
    Wo = (W + 2 * p - k) // s + 1

    xb = x_nhwc.astype(jnp.bfloat16)                     # bf16 MXU operands
    xp = jnp.pad(xb, ((0, 0), (p, p), (p, p), (0, 0)))
    cols = []
    for kh in range(k):
        for kw in range(k):
            cols.append(lax.slice(
                xp, (0, kh, kw, 0),
                (N, kh + s * (Ho - 1) + 1, kw + s * (Wo - 1) + 1, cin),
                (1, s, s, 1)))
    patches = jnp.concatenate(cols, axis=-1).reshape(N * Ho * Wo, k * k * cin)

    out2d = _matmul_bias_act(patches, op["w_packed"], op["b_packed"], op["act"])
    return out2d[:, :conv_cout].reshape(N, Ho, Wo, conv_cout)


def _upsample2x(x_nhwc):
    return jnp.repeat(jnp.repeat(x_nhwc, 2, axis=1), 2, axis=2)


def _glu(x_nhwc):
    c = x_nhwc.shape[-1] // 2
    return x_nhwc[..., :c] * jax.nn.sigmoid(x_nhwc[..., c:])


# ---------------------------------------------------------------------------
# Model construction (synthetic weights, packed once at build time)
# ---------------------------------------------------------------------------
_CHANNEL_DICT = {4: 512, 8: 512, 16: 256, 32: 128, 64: 64, 128: 64,
                 256: 32, 512: 16, 1024: 8}


def _make_conv_op(key, *, cin, conv_cout, block_cout, k, s, p,
                  bias, act, bn, pre_up, post_glu):
    kw_, kb_, kbn = jax.random.split(key, 3)
    fan_in = cin * k * k
    w = jax.random.normal(kw_, (conv_cout, cin, k, k), jnp.float32) / np.sqrt(fan_in)
    b = (0.01 * jax.random.normal(kb_, (conv_cout,), jnp.float32) if bias
         else jnp.zeros((conv_cout,), jnp.float32))
    if bn:  # eval-mode BatchNorm folded into the conv (per-channel scale/shift)
        kg, kbeta, km, kv = jax.random.split(kbn, 4)
        gamma = 1.0 + 0.1 * jax.random.normal(kg, (conv_cout,), jnp.float32)
        beta = 0.1 * jax.random.normal(kbeta, (conv_cout,), jnp.float32)
        mean = 0.1 * jax.random.normal(km, (conv_cout,), jnp.float32)
        var = 1.0 + 0.5 * jax.random.uniform(kv, (conv_cout,), jnp.float32)
        scale = gamma / jnp.sqrt(var + 1e-5)
        w = w * scale.reshape(-1, 1, 1, 1)
        b = beta + (b - mean) * scale

    # Pack once: (Cout,Cin,KH,KW) -> (KH,KW,Cin,Cout) -> (K,Cout) -> pad -> bf16.
    K = k * k * cin
    K_pad = _round_up(K, 128)
    N_pad = _round_up(conv_cout, 128)
    w2d = jnp.transpose(w, (2, 3, 1, 0)).reshape(K, conv_cout)
    w_packed = jnp.zeros((K_pad, N_pad), jnp.float32).at[:K, :conv_cout].set(w2d)
    w_packed = w_packed.astype(jnp.bfloat16)
    b_packed = jnp.zeros((1, N_pad), jnp.float32).at[0, :conv_cout].set(b)

    return dict(cin=cin, conv_cout=conv_cout, cout=block_cout, k=k, s=s, p=p,
                act=act, pre_up=pre_up, post_glu=post_glu,
                w_packed=w_packed, b_packed=b_packed,
                w_f32=w, b_f32=b)


def build_single_disc_seg(key, nc=None, ndf=None, start_sz=256, end_sz=8):
    if start_sz not in _CHANNEL_DICT:
        sizes = np.array(sorted(_CHANNEL_DICT.keys()))
        start_sz = int(sizes[np.argmin(np.abs(sizes - start_sz))])
    nfc = {k: (ndf if ndf is not None else v) for k, v in _CHANNEL_DICT.items()}
    if nc is not None:
        nfc[start_sz] = nc
    start0 = start_sz

    main_cfg, up_cfg_rev = [], []
    # up_layers.append(conv2d(nfc[start_sz], 1, 3, 1, 1, bias=False))
    up_cfg_rev.append(dict(cin=nfc[start0], conv_cout=1, block_cout=1, k=3, s=1, p=1,
                           bias=False, act=None, bn=False, pre_up=False, post_glu=False))
    sz = start0
    while sz > end_sz:
        # DownBlock: conv2d(nfc[sz], nfc[sz//2], 4, 2, 1) + LeakyReLU(0.2)
        main_cfg.append(dict(cin=nfc[sz], conv_cout=nfc[sz // 2], block_cout=nfc[sz // 2],
                             k=4, s=2, p=1, bias=True, act=0.2, bn=False,
                             pre_up=False, post_glu=False))
        # UpBlockSmall(nfc[sz//2], nfc[sz]): up2x -> conv(in, 2*out, 3,1,1, no bias)
        #                                    -> BatchNorm -> GLU
        up_cfg_rev.append(dict(cin=nfc[sz // 2], conv_cout=2 * nfc[sz], block_cout=nfc[sz],
                               k=3, s=1, p=1, bias=False, act=None, bn=True,
                               pre_up=True, post_glu=True))
        sz //= 2
    # main tail: conv2d(nfc[end_sz], 1, 3, 1, 1, bias=False)
    main_cfg.append(dict(cin=nfc[end_sz], conv_cout=1, block_cout=1, k=3, s=1, p=1,
                         bias=False, act=None, bn=False, pre_up=False, post_glu=False))
    # up head (pre-reverse tail): [LeakyReLU(0.2), conv2d(1, nfc[end_sz], 3,1,1, no bias)]
    # after reversal the conv runs first, then LeakyReLU -> fuse the activation.
    up_cfg_rev.append(dict(cin=1, conv_cout=nfc[end_sz], block_cout=nfc[end_sz],
                           k=3, s=1, p=1, bias=False, act=0.2, bn=False,
                           pre_up=False, post_glu=False))
    up_cfg = list(reversed(up_cfg_rev))

    main_ops, up_ops, i = [], [], 0
    for cfg in main_cfg:
        main_ops.append(_make_conv_op(jax.random.fold_in(key, i), **cfg))
        i += 1
    for cfg in up_cfg:
        up_ops.append(_make_conv_op(jax.random.fold_in(key, i), **cfg))
        i += 1
    return dict(main=main_ops, up=up_ops)


# ---------------------------------------------------------------------------
# Forward pass (matches SingleDisc_seg.forward: returns (logit, seg_out))
# ---------------------------------------------------------------------------
def single_disc_seg_forward(x_nchw, model, c=None):
    # `c` (conditioning) is accepted but unused, like the reference module.
    h = jnp.transpose(x_nchw, (0, 2, 3, 1)).astype(jnp.float32)   # NCHW -> NHWC
    for op in model["main"]:
        h = conv2d_pallas(h, op)
    logit_nhwc = h

    u = logit_nhwc
    for op in model["up"]:
        if op["pre_up"]:
            u = _upsample2x(u)
        u = conv2d_pallas(u, op)
        if op["post_glu"]:
            u = _glu(u)

    logit = jnp.transpose(logit_nhwc, (0, 3, 1, 2))               # NHWC -> NCHW
    seg_out = jnp.transpose(u, (0, 3, 1, 2))
    return logit, seg_out


# ---------------------------------------------------------------------------
# Pure-JAX reference (same bf16-operand / f32-accumulate math) for checking
# ---------------------------------------------------------------------------
def _ref_forward(x_nchw, model):
    def conv(x, op):
        xb = x.astype(jnp.bfloat16)
        wb = op["w_f32"].astype(jnp.bfloat16)
        y = lax.conv_general_dilated(
            xb, wb, (op["s"], op["s"]), [(op["p"], op["p"])] * 2,
            dimension_numbers=("NCHW", "OIHW", "NCHW"),
            preferred_element_type=jnp.float32)
        y = y + op["b_f32"].reshape(1, -1, 1, 1)
        if op["act"] is not None:
            y = jnp.where(y >= 0, y, op["act"] * y)
        return y

    h = x_nchw.astype(jnp.float32)
    for op in model["main"]:
        h = conv(h, op)
    logit = h
    u = logit
    for op in model["up"]:
        if op["pre_up"]:
            u = jnp.repeat(jnp.repeat(u, 2, axis=2), 2, axis=3)
        u = conv(u, op)
        if op["post_glu"]:
            c = u.shape[1] // 2
            u = u[:, :c] * jax.nn.sigmoid(u[:, c:])
    return logit, u


# ---------------------------------------------------------------------------
if __name__ == "__main__":
    key = jax.random.PRNGKey(0)
    B, nc, start_sz, end_sz, ndf = 2, 4, 16, 8, 8

    k_x, k_p = jax.random.split(key)
    x = jax.random.normal(k_x, (B, nc, start_sz, start_sz), jnp.float32)
    model = build_single_disc_seg(k_p, nc=nc, ndf=ndf, start_sz=start_sz, end_sz=end_sz)

    fwd = jax.jit(lambda inp: single_disc_seg_forward(inp, model))
    logit, seg_out = fwd(x)
    logit = jax.block_until_ready(logit)
    seg_out = jax.block_until_ready(seg_out)

    ref_logit, ref_seg = jax.jit(lambda inp: _ref_forward(inp, model))(x)
    ref_logit = jax.block_until_ready(ref_logit)
    ref_seg = jax.block_until_ready(ref_seg)

    assert logit.shape == ref_logit.shape == (B, 1, end_sz, end_sz)
    assert seg_out.shape == ref_seg.shape == (B, 1, start_sz, start_sz)
    assert jnp.allclose(logit, ref_logit, atol=1e-2, rtol=1e-2), \
        float(jnp.max(jnp.abs(logit - ref_logit)))
    assert jnp.allclose(seg_out, ref_seg, atol=1e-2, rtol=1e-2), \
        float(jnp.max(jnp.abs(seg_out - ref_seg)))

    print("KERNEL_OK")
</pallas_src>

<mosaic_0001>
module attributes {stable_mosaic.version = 11 : i64} {
  func.func @_mm_bias_act_oneshot_kernel(%arg0: i32, %arg1: i32, %arg2: memref<128x128xbf16, #tpu.memory_space<vmem>>, %arg3: memref<128x128xbf16, #tpu.memory_space<vmem>>, %arg4: memref<1x128xf32, #tpu.memory_space<vmem>>, %arg5: memref<128x128xf32, #tpu.memory_space<vmem>>) attributes {dimension_semantics = [#tpu.dimension_semantics<parallel>, #tpu.dimension_semantics<parallel>], iteration_bounds = array<i64: 1, 1>, scalar_prefetch = 0 : i64, scratch_operands = 0 : i64, tpu.core_type = #tpu.core_type<tc>, window_params = [{transform_indices = @transform_0, window_bounds = array<i64: 128, 128>}, {transform_indices = @transform_1, window_bounds = array<i64: 128, 128>}, {transform_indices = @transform_2, window_bounds = array<i64: 1, 128>}, {transform_indices = @transform_3, window_bounds = array<i64: 128, 128>}]} {
    %c0 = arith.constant 0 : index
    %c0_0 = arith.constant 0 : index
    %0 = vector.load %arg2[%c0, %c0_0] : memref<128x128xbf16, #tpu.memory_space<vmem>>, vector<128x128xbf16>
    %c0_1 = arith.constant 0 : index
    %c0_2 = arith.constant 0 : index
    %1 = vector.load %arg3[%c0_1, %c0_2] : memref<128x128xbf16, #tpu.memory_space<vmem>>, vector<128x128xbf16>
    %cst = arith.constant dense<0.000000e+00> : vector<128x128xf32>
    %2 = tpu.matmul %0, %1, %cst {dimension_numbers = #tpu.dot_dimension_numbers<[1], [0], [0], [1], [0, 0, 1, 1], [], []>} : vector<128x128xbf16>, vector<128x128xbf16>, vector<128x128xf32> -> vector<128x128xf32>
    %c0_3 = arith.constant 0 : index
    %c0_4 = arith.constant 0 : index
    %3 = vector.load %arg4[%c0_3, %c0_4] : memref<1x128xf32, #tpu.memory_space<vmem>>, vector<1x128xf32>
    %4 = vector.broadcast %3 : vector<1x128xf32> to vector<128x128xf32>
    %5 = arith.addf %2, %4 : vector<128x128xf32>
    %cst_5 = arith.constant 0.000000e+00 : f32
    %6 = vector.broadcast %cst_5 : f32 to vector<128x128xf32>
    %7 = arith.cmpf oge, %5, %6 : vector<128x128xf32>
    %cst_6 = arith.constant 2.000000e-01 : f32
    %8 = vector.broadcast %cst_6 : f32 to vector<128x128xf32>
    %9 = arith.mulf %8, %5 : vector<128x128xf32>
    %10 = arith.select %7, %5, %9 : vector<128x128xi1>, vector<128x128xf32>
    %c0_7 = arith.constant 0 : index
    %c0_8 = arith.constant 0 : index
    %11 = vector.load %arg5[%c0_7, %c0_8] : memref<128x128xf32, #tpu.memory_space<vmem>>, vector<128x128xf32>
    tpu.vector_store %arg5[%c0_7, %c0_8], %10 {strides = array<i32>} : memref<128x128xf32, #tpu.memory_space<vmem>>, vector<128x128xf32>,
    return
  }
  func.func @transform_0(%arg0: i32, %arg1: i32) -> (i32, i32) {
    %c0_i32 = arith.constant 0 : i32
    %c0_i32_0 = arith.constant 0 : i32
    return %arg0, %c0_i32 : i32, i32
  }
  func.func @transform_1(%arg0: i32, %arg1: i32) -> (i32, i32) {
    %c0_i32 = arith.constant 0 : i32
    %c0_i32_0 = arith.constant 0 : i32
    return %c0_i32, %arg1 : i32, i32
  }
  func.func @transform_2(%arg0: i32, %arg1: i32) -> (i32, i32) {
    %c0_i32 = arith.constant 0 : i32
    %c0_i32_0 = arith.constant 0 : i32
    return %c0_i32, %arg1 : i32, i32
  }
  func.func @transform_3(%arg0: i32, %arg1: i32) -> (i32, i32) {
    %c0_i32 = arith.constant 0 : i32
    return %arg0, %arg1 : i32, i32
  }
}

module attributes {stable_mosaic.version = 11 : i64} {
  func.func @_mm_bias_act_oneshot_kernel(%arg0: i32, %arg1: i32, %arg2: memref<128x128xbf16, #tpu.memory_space<vmem>>, %arg3: memref<128x128xbf16, #tpu.memory_space<vmem>>, %arg4: memref<1x128xf32, #tpu.memory_space<vmem>>, %arg5: memref<128x128xf32, #tpu.memory_space<vmem>>) attributes {dimension_semantics = [#tpu.dimension_semantics<parallel>, #tpu.dimension_semantics<parallel>], iteration_bounds = array<i64: 1, 1>, scalar_prefetch = 0 : i64, scratch_operands = 0 : i64, tpu.core_type = #tpu.core_type<tc>, window_params = [{transform_indices = @transform_0, window_bounds = array<i64: 128, 128>}, {transform_indices = @transform_1, window_bounds = array<i64: 128, 128>}, {transform_indices = @transform_2, window_bounds = array<i64: 1, 128>}, {transform_indices = @transform_3, window_bounds = array<i64: 128, 128>}]} {
    %c0 = arith.constant 0 : index
    %c0_0 = arith.constant 0 : index
    %0 = vector.load %arg2[%c0, %c0_0] : memref<128x128xbf16, #tpu.memory_space<vmem>>, vector<128x128xbf16>
    %c0_1 = arith.constant 0 : index
    %c0_2 = arith.constant 0 : index
    %1 = vector.load %arg3[%c0_1, %c0_2] : memref<128x128xbf16, #tpu.memory_space<vmem>>, vector<128x128xbf16>
    %cst = arith.constant dense<0.000000e+00> : vector<128x128xf32>
    %2 = tpu.matmul %0, %1, %cst {dimension_numbers = #tpu.dot_dimension_numbers<[1], [0], [0], [1], [0, 0, 1, 1], [], []>} : vector<128x128xbf16>, vector<128x128xbf16>, vector<128x128xf32> -> vector<128x128xf32>
    %c0_3 = arith.constant 0 : index
    %c0_4 = arith.constant 0 : index
    %3 = vector.load %arg4[%c0_3, %c0_4] : memref<1x128xf32, #tpu.memory_space<vmem>>, vector<1x128xf32>
    %4 = vector.broadcast %3 : vector<1x128xf32> to vector<128x128xf32>
    %5 = arith.addf %2, %4 : vector<128x128xf32>
    %c0_5 = arith.constant 0 : index
    %c0_6 = arith.constant 0 : index
    %6 = vector.load %arg5[%c0_5, %c0_6] : memref<128x128xf32, #tpu.memory_space<vmem>>, vector<128x128xf32>
    tpu.vector_store %arg5[%c0_5, %c0_6], %5 {strides = array<i32>} : memref<128x128xf32, #tpu.memory_space<vmem>>, vector<128x128xf32>,
    return
  }
  func.func @transform_0(%arg0: i32, %arg1: i32) -> (i32, i32) {
    %c0_i32 = arith.constant 0 : i32
    %c0_i32_0 = arith.constant 0 : i32
    return %arg0, %c0_i32 : i32, i32
  }
  func.func @transform_1(%arg0: i32, %arg1: i32) -> (i32, i32) {
    %c0_i32 = arith.constant 0 : i32
    %c0_i32_0 = arith.constant 0 : i32
    return %c0_i32, %arg1 : i32, i32
  }
  func.func @transform_2(%arg0: i32, %arg1: i32) -> (i32, i32) {
    %c0_i32 = arith.constant 0 : i32
    %c0_i32_0 = arith.constant 0 : i32
    return %c0_i32, %arg1 : i32, i32
  }
  func.func @transform_3(%arg0: i32, %arg1: i32) -> (i32, i32) {
    %c0_i32 = arith.constant 0 : i32
    return %arg0, %arg1 : i32, i32
  }
}

module attributes {stable_mosaic.version = 11 : i64} {
  func.func @_mm_bias_act_oneshot_kernel(%arg0: i32, %arg1: i32, %arg2: memref<512x128xbf16, #tpu.memory_space<vmem>>, %arg3: memref<128x128xbf16, #tpu.memory_space<vmem>>, %arg4: memref<1x128xf32, #tpu.memory_space<vmem>>, %arg5: memref<512x128xf32, #tpu.memory_space<vmem>>) attributes {dimension_semantics = [#tpu.dimension_semantics<parallel>, #tpu.dimension_semantics<parallel>], iteration_bounds = array<i64: 1, 1>, scalar_prefetch = 0 : i64, scratch_operands = 0 : i64, tpu.core_type = #tpu.core_type<tc>, window_params = [{transform_indices = @transform_0, window_bounds = array<i64: 512, 128>}, {transform_indices = @transform_1, window_bounds = array<i64: 128, 128>}, {transform_indices = @transform_2, window_bounds = array<i64: 1, 128>}, {transform_indices = @transform_3, window_bounds = array<i64: 512, 128>}]} {
    %c0 = arith.constant 0 : index
    %c0_0 = arith.constant 0 : index
    %0 = vector.load %arg2[%c0, %c0_0] : memref<512x128xbf16, #tpu.memory_space<vmem>>, vector<512x128xbf16>
    %c0_1 = arith.constant 0 : index
    %c0_2 = arith.constant 0 : index
    %1 = vector.load %arg3[%c0_1, %c0_2] : memref<128x128xbf16, #tpu.memory_space<vmem>>, vector<128x128xbf16>
    %cst = arith.constant dense<0.000000e+00> : vector<512x128xf32>
    %2 = tpu.matmul %0, %1, %cst {dimension_numbers = #tpu.dot_dimension_numbers<[1], [0], [0], [1], [0, 0, 1, 1], [], []>} : vector<512x128xbf16>, vector<128x128xbf16>, vector<512x128xf32> -> vector<512x128xf32>
    %c0_3 = arith.constant 0 : index
    %c0_4 = arith.constant 0 : index
    %3 = vector.load %arg4[%c0_3, %c0_4] : memref<1x128xf32, #tpu.memory_space<vmem>>, vector<1x128xf32>
    %4 = vector.broadcast %3 : vector<1x128xf32> to vector<512x128xf32>
    %5 = arith.addf %2, %4 : vector<512x128xf32>
    %c0_5 = arith.constant 0 : index
    %c0_6 = arith.constant 0 : index
    %6 = vector.load %arg5[%c0_5, %c0_6] : memref<512x128xf32, #tpu.memory_space<vmem>>, vector<512x128xf32>
    tpu.vector_store %arg5[%c0_5, %c0_6], %5 {strides = array<i32>} : memref<512x128xf32, #tpu.memory_space<vmem>>, vector<512x128xf32>,
    return
  }
  func.func @transform_0(%arg0: i32, %arg1: i32) -> (i32, i32) {
    %c0_i32 = arith.constant 0 : i32
    %c0_i32_0 = arith.constant 0 : i32
    return %arg0, %c0_i32 : i32, i32
  }
  func.func @transform_1(%arg0: i32, %arg1: i32) -> (i32, i32) {
    %c0_i32 = arith.constant 0 : i32
    %c0_i32_0 = arith.constant 0 : i32
    return %c0_i32, %arg1 : i32, i32
  }
  func.func @transform_2(%arg0: i32, %arg1: i32) -> (i32, i32) {
    %c0_i32 = arith.constant 0 : i32
    %c0_i32_0 = arith.constant 0 : i32
    return %c0_i32, %arg1 : i32, i32
  }
  func.func @transform_3(%arg0: i32, %arg1: i32) -> (i32, i32) {
    %c0_i32 = arith.constant 0 : i32
    return %arg0, %arg1 : i32, i32
  }
}

</mosaic_0001>

<llo_original>
// kernel: _lambda_.5
$region0: #{_lambda_.5}
  #allocation0 [shape = 'u32[]', space=smem, size = 0x4, offset = 0x4, fixed_abs, tag = 'smem constant byte address 0x4 - core index']
  #allocation1 [shape = 'u32[144,128]{1,0:T(1,128)}', space=vmem, size = 0x12000, scoped, tag = 'internal scratch']
  %s0 = inlined_call_operand.vmem [shape: bf16[128,128], index: 0, kind: input, shape index: {}]
  %s1 = inlined_call_operand.vmem [shape: bf16[128,128], index: 1, kind: input, shape index: {}]
  %s2 = inlined_call_operand.vmem [shape: f32[1,128], index: 2, kind: input, shape index: {}]
  %s3 = inlined_call_operand.vmem [shape: f32[128,128], index: 3, kind: output, shape index: {}]
  %s4 = sld [smem:[#allocation0]]
  $region22: #{_lambda_.5} parent=0
    _
  %s6 = ssub.s32 1, %s4
  %s7 = scalar_select 0, %s6, %s4
  // Predicated region
  $region2: #{_lambda_.5} parent=0 // pred_check
    _
  $region3: #{_lambda_.5} parent=0 // pred_check_branch
    %9 = sbr.rel (0) target = $region5
  $region4: #{_lambda_.5} parent=0 // pred_region
    _
  $region5: #{_lambda_.5} parent=0 // pred_fallthru
    _
  // Predicated region
  $region6: #{_lambda_.5} parent=0 // pred_check
    _
  $region7: #{_lambda_.5} parent=0 // pred_check_branch
    %11 = sbr.rel (0) target = $region9
  $region8: #{_lambda_.5} parent=0 // pred_region
    _
  $region9: #{_lambda_.5} parent=0 // pred_fallthru
    _
  // Predicated region
  $region10: #{_lambda_.5} parent=0 // pred_check
    _
  $region11: #{_lambda_.5} parent=0 // pred_check_branch
    %13 = sbr.rel (0) target = $region13
  $region12: #{_lambda_.5} parent=0 // pred_region
    _
  $region13: #{_lambda_.5} parent=0 // pred_fallthru
    _
  %v15 = vld [vmem:[%s0] sm:$0xf]
  %v16 = vld [vmem:[%s0 + $0x4] sm:$0xf]
  %v17 = vld [vmem:[%s0 + $0x8] sm:$0xf]
  %v18 = vld [vmem:[%s0 + $0xc] sm:$0xf]
  %v19 = vld [vmem:[%s0 + $0x10] sm:$0xf]
  %v20 = vld [vmem:[%s0 + $0x14] sm:$0xf]
  %v21 = vld [vmem:[%s0 + $0x18] sm:$0xf]
  %v22 = vld [vmem:[%s0 + $0x1c] sm:$0xf]
  %v23 = vld [vmem:[%s0 + $0x20] sm:$0xf]
  %v24 = vld [vmem:[%s0 + $0x24] sm:$0xf]
  %v25 = vld [vmem:[%s0 + $0x28] sm:$0xf]
  %v26 = vld [vmem:[%s0 + $0x2c] sm:$0xf]
  %v27 = vld [vmem:[%s0 + $0x30] sm:$0xf]
  %v28 = vld [vmem:[%s0 + $0x34] sm:$0xf]
  %v29 = vld [vmem:[%s0 + $0x38] sm:$0xf]
  %v30 = vld [vmem:[%s0 + $0x3c] sm:$0xf]
  %v31 = vld [vmem:[%s1] sm:$0xf]
  %v32 = vld [vmem:[%s1 + $0x4] sm:$0xf]
  %v33 = vld [vmem:[%s1 + $0x8] sm:$0xf]
  %v34 = vld [vmem:[%s1 + $0xc] sm:$0xf]
  %v35 = vld [vmem:[%s1 + $0x10] sm:$0xf]
  %v36 = vld [vmem:[%s1 + $0x14] sm:$0xf]
  %v37 = vld [vmem:[%s1 + $0x18] sm:$0xf]
  %v38 = vld [vmem:[%s1 + $0x1c] sm:$0xf]
  %v39 = vld [vmem:[%s1 + $0x20] sm:$0xf]
  %v40 = vld [vmem:[%s1 + $0x24] sm:$0xf]
  %v41 = vld [vmem:[%s1 + $0x28] sm:$0xf]
  %v42 = vld [vmem:[%s1 + $0x2c] sm:$0xf]
  %v43 = vld [vmem:[%s1 + $0x30] sm:$0xf]
  %v44 = vld [vmem:[%s1 + $0x34] sm:$0xf]
  %v45 = vld [vmem:[%s1 + $0x38] sm:$0xf]
  %v46 = vld [vmem:[%s1 + $0x3c] sm:$0xf]
  %v47 = vld [vmem:[%s2] sm:$0x1]
  %v49 = vlaneseq
  %v50 = vshrl.u32 %v49, 7
  %v51 = vsub.s32 0, %v50
  %v52 = vrot.slane %v47, %v51
  %v70 = vunpack.c.l.b16 %v15
  %v71 = vunpack.c.l.b16 %v16
  %v72 = vunpack.c.l.b16 %v17
  %v73 = vunpack.c.l.b16 %v18
  %v74 = vunpack.c.l.b16 %v19
  %v75 = vunpack.c.l.b16 %v20
  %v76 = vunpack.c.l.b16 %v21
  %v77 = vunpack.c.l.b16 %v22
  %v78 = vunpack.c.l.b16 %v23
  %v79 = vunpack.c.l.b16 %v24
  %v80 = vunpack.c.l.b16 %v25
  %v81 = vunpack.c.l.b16 %v26
  %v82 = vunpack.c.l.b16 %v27
  %v83 = vunpack.c.l.b16 %v28
  %v84 = vunpack.c.l.b16 %v29
  %v85 = vunpack.c.l.b16 %v30
  %v86 = vpack.c.b16 %v71, %v70
  %v87 = vpack.c.b16 %v73, %v72
  %v88 = vpack.c.b16 %v75, %v74
  %v89 = vpack.c.b16 %v77, %v76
  %v90 = vpack.c.b16 %v79, %v78
  %v91 = vpack.c.b16 %v81, %v80
  %v92 = vpack.c.b16 %v83, %v82
  %v93 = vpack.c.b16 %v85, %v84
  %v118 = vunpack.c.l.b16 %v31
  %v119 = vunpack.c.l.b16 %v32
  %v120 = vunpack.c.l.b16 %v33
  %v121 = vunpack.c.l.b16 %v34
  %v122 = vunpack.c.l.b16 %v35
  %v123 = vunpack.c.l.b16 %v36
  %v124 = vunpack.c.l.b16 %v37
  %v125 = vunpack.c.l.b16 %v38
  %v126 = vunpack.c.l.b16 %v39
  %v127 = vunpack.c.l.b16 %v40
  %v128 = vunpack.c.l.b16 %v41
  %v129 = vunpack.c.l.b16 %v42
  %v130 = vunpack.c.l.b16 %v43
  %v131 = vunpack.c.l.b16 %v44
  %v132 = vunpack.c.l.b16 %v45
  %v133 = vunpack.c.l.b16 %v46
  %v134 = vpack.c.b16 %v119, %v118
  %v135 = vpack.c.b16 %v121, %v120
  %v136 = vpack.c.b16 %v123, %v122
  %v137 = vpack.c.b16 %v125, %v124
  %v138 = vpack.c.b16 %v127, %v126
  %v139 = vpack.c.b16 %v129, %v128
  %v140 = vpack.c.b16 %v131, %v130
  %v141 = vpack.c.b16 %v133, %v132
  %150 = vmatprep.subr.bf16.mxu0 0
  %151 = vmatpush1.bf16.msra.mxu0 %v134
  %152 = vmatprep.subr.bf16.mxu0 0
  %153 = vmatpush1.bf16.msra.mxu0 %v135
  %154 = vmatprep.subr.bf16.mxu0 0
  %155 = vmatpush1.bf16.msra.mxu0 %v136
  %156 = vmatprep.subr.bf16.mxu0 0
  %157 = vmatpush1.bf16.msra.mxu0 %v137
  %158 = vmatprep.subr.bf16.mxu0 0
  %159 = vmatpush1.bf16.msra.mxu0 %v138
  %160 = vmatprep.subr.bf16.mxu0 0
  %161 = vmatpush1.bf16.msra.mxu0 %v139
  %162 = vmatprep.subr.bf16.mxu0 0
  %163 = vmatpush1.bf16.msra.mxu0 %v140
  %164 = vmatprep.subr.bf16.mxu0 0
  %165 = vmatpush1.bf16.msra.mxu0 %v141
  %166 = vmatprep.subr.bf16.mxu0 0
  %167 = vmatpush1.bf16.msra.mxu0 0
  %168 = vmatprep.subr.bf16.mxu0 0
  %169 = vmatpush1.bf16.msra.mxu0 0
  %170 = vmatprep.subr.bf16.mxu0 0
  %171 = vmatpush1.bf16.msra.mxu0 0
  %172 = vmatprep.subr.bf16.mxu0 0
  %173 = vmatpush1.bf16.msra.mxu0 0
  %174 = vmatprep.subr.bf16.mxu0 0
  %175 = vmatpush1.bf16.msra.mxu0 0
  %176 = vmatprep.subr.bf16.mxu0 0
  %177 = vmatpush1.bf16.msra.mxu0 0
  %178 = vmatprep.subr.bf16.mxu0 0
  %179 = vmatpush1.bf16.msra.mxu0 0
  %180 = vmatprep.subr.bf16.mxu0 0
  %181 = vmatpush1.bf16.msra.mxu0 0
  %182 = vmatprep.mubr.bf16.mxu0 0
  %183 = vmatmul.mubr.bf16.gmra.mrb[0].mxu0 %v86
  %v184 = vpop.f32.mrb[0].mxu0
  %v185 = vadd.f32 %v52, %v184
  %v186 = vpop.f32.mrb[0].mxu0
  %v187 = vpop.f32.mrb[0].mxu0
  %v188 = vadd.f32 %v52, %v187
  %v189 = vpop.f32.mrb[0].mxu0
  %190 = vmatprep.mubr.bf16.mxu0 0
  %191 = vmatmul.mubr.bf16.gmra.mrb[0].mxu0 %v87
  %v192 = vpop.f32.mrb[0].mxu0
  %v193 = vadd.f32 %v52, %v192
  %v194 = vpop.f32.mrb[0].mxu0
  %v195 = vpop.f32.mrb[0].mxu0
  %v196 = vadd.f32 %v52, %v195
  %v197 = vpop.f32.mrb[0].mxu0
  %198 = vmatprep.mubr.bf16.mxu0 0
  %199 = vmatmul.mubr.bf16.gmra.mrb[0].mxu0 %v88
  %v200 = vpop.f32.mrb[0].mxu0
  %v201 = vadd.f32 %v52, %v200
  %v202 = vpop.f32.mrb[0].mxu0
  %v203 = vpop.f32.mrb[0].mxu0
  %v204 = vadd.f32 %v52, %v203
  %v205 = vpop.f32.mrb[0].mxu0
  %206 = vmatprep.mubr.bf16.mxu0 0
  %207 = vmatmul.mubr.bf16.gmra.mrb[0].mxu0 %v89
  %v208 = vpop.f32.mrb[0].mxu0
  %v209 = vadd.f32 %v52, %v208
  %v210 = vpop.f32.mrb[0].mxu0
  %v211 = vpop.f32.mrb[0].mxu0
  %v212 = vadd.f32 %v52, %v211
  %v213 = vpop.f32.mrb[0].mxu0
  %214 = vmatprep.mubr.bf16.mxu0 0
  %215 = vmatmul.mubr.bf16.gmra.mrb[0].mxu0 %v90
  %v216 = vpop.f32.mrb[0].mxu0
  %v217 = vadd.f32 %v52, %v216
  %v218 = vpop.f32.mrb[0].mxu0
  %v219 = vpop.f32.mrb[0].mxu0
  %v220 = vadd.f32 %v52, %v219
  %v221 = vpop.f32.mrb[0].mxu0
  %222 = vmatprep.mubr.bf16.mxu0 0
  %223 = vmatmul.mubr.bf16.gmra.mrb[0].mxu0 %v91
  %v224 = vpop.f32.mrb[0].mxu0
  %v225 = vadd.f32 %v52, %v224
  %v226 = vpop.f32.mrb[0].mxu0
  %v227 = vpop.f32.mrb[0].mxu0
  %v228 = vadd.f32 %v52, %v227
  %v229 = vpop.f32.mrb[0].mxu0
  %230 = vmatprep.mubr.bf16.mxu0 0
  %231 = vmatmul.mubr.bf16.gmra.mrb[0].mxu0 %v92
  %v232 = vpop.f32.mrb[0].mxu0
  %v233 = vadd.f32 %v52, %v232
  %v234 = vpop.f32.mrb[0].mxu0
  %v235 = vpop.f32.mrb[0].mxu0
  %v236 = vadd.f32 %v52, %v235
  %v237 = vpop.f32.mrb[0].mxu0
  %238 = vmatprep.mubr.bf16.mxu0 0
  %239 = vmatmul.mubr.bf16.gmra.mrb[0].mxu0 %v93
  %v240 = vpop.f32.mrb[0].mxu0
  %v241 = vadd.f32 %v52, %v240
  %v242 = vpop.f32.mrb[0].mxu0
  %v243 = vpop.f32.mrb[0].mxu0
  %v244 = vadd.f32 %v52, %v243
  %v245 = vpop.f32.mrb[0].mxu0
  %246 = vdwg.mxu0
  %vm247 = vcmp.ge.f32.partialorder %v185, 0.0
  %vm248 = vcmp.ge.f32.partialorder %v188, 0.0
  %vm249 = vcmp.ge.f32.partialorder %v193, 0.0
  %vm250 = vcmp.ge.f32.partialorder %v196, 0.0
  %vm251 = vcmp.ge.f32.partialorder %v201, 0.0
  %vm252 = vcmp.ge.f32.partialorder %v204, 0.0
  %vm253 = vcmp.ge.f32.partialorder %v209, 0.0
  %vm254 = vcmp.ge.f32.partialorder %v212, 0.0
  %vm255 = vcmp.ge.f32.partialorder %v217, 0.0
  %vm256 = vcmp.ge.f32.partialorder %v220, 0.0
  %vm257 = vcmp.ge.f32.partialorder %v225, 0.0
  %vm258 = vcmp.ge.f32.partialorder %v228, 0.0
  %vm259 = vcmp.ge.f32.partialorder %v233, 0.0
  %vm260 = vcmp.ge.f32.partialorder %v236, 0.0
  %vm261 = vcmp.ge.f32.partialorder %v241, 0.0
  %vm262 = vcmp.ge.f32.partialorder %v244, 0.0
  %v263 = vmul.f32 %v185, 0.2
  %v264 = vmul.f32 %v188, 0.2
  %v265 = vmul.f32 %v193, 0.2
  %v266 = vmul.f32 %v196, 0.2
  %v267 = vmul.f32 %v201, 0.2
  %v268 = vmul.f32 %v204, 0.2
  %v269 = vmul.f32 %v209, 0.2
  %v270 = vmul.f32 %v212, 0.2
  %v271 = vmul.f32 %v217, 0.2
  %v272 = vmul.f32 %v220, 0.2
  %v273 = vmul.f32 %v225, 0.2
  %v274 = vmul.f32 %v228, 0.2
  %v275 = vmul.f32 %v233, 0.2
  %v276 = vmul.f32 %v236, 0.2
  %v277 = vmul.f32 %v241, 0.2
  %v278 = vmul.f32 %v244, 0.2
  %v279 = vsel %vm247, %v185, %v263
  %v280 = vsel %vm248, %v188, %v264
  %v281 = vsel %vm249, %v193, %v265
  %v282 = vsel %vm250, %v196, %v266
  %v283 = vsel %vm251, %v201, %v267
  %v284 = vsel %vm252, %v204, %v268
  %v285 = vsel %vm253, %v209, %v269
  %v286 = vsel %vm254, %v212, %v270
  %v287 = vsel %vm255, %v217, %v271
  %v288 = vsel %vm256, %v220, %v272
  %v289 = vsel %vm257, %v225, %v273
  %v290 = vsel %vm258, %v228, %v274
  %v291 = vsel %vm259, %v233, %v275
  %v292 = vsel %vm260, %v236, %v276
  %v293 = vsel %vm261, %v241, %v277
  %v294 = vsel %vm262, %v244, %v278
  %295 = vst [vmem:[%s3] sm:$0xff] %v279
  %296 = vst [vmem:[%s3 + $0x8] sm:$0xff] %v280
  %297 = vst [vmem:[%s3 + $0x10] sm:$0xff] %v281
  %298 = vst [vmem:[%s3 + $0x18] sm:$0xff] %v282
  %299 = vst [vmem:[%s3 + $0x20] sm:$0xff] %v283
  %300 = vst [vmem:[%s3 + $0x28] sm:$0xff] %v284
  %301 = vst [vmem:[%s3 + $0x30] sm:$0xff] %v285
  %302 = vst [vmem:[%s3 + $0x38] sm:$0xff] %v286
  %303 = vst [vmem:[%s3 + $0x40] sm:$0xff] %v287
  %304 = vst [vmem:[%s3 + $0x48] sm:$0xff] %v288
  %305 = vst [vmem:[%s3 + $0x50] sm:$0xff] %v289
  %306 = vst [vmem:[%s3 + $0x58] sm:$0xff] %v290
  %307 = vst [vmem:[%s3 + $0x60] sm:$0xff] %v291
  %308 = vst [vmem:[%s3 + $0x68] sm:$0xff] %v292
  %309 = vst [vmem:[%s3 + $0x70] sm:$0xff] %v293
  %310 = vst [vmem:[%s3 + $0x78] sm:$0xff] %v294
  // Predicated region
  $region14: #{_lambda_.5} parent=0 // pred_check
    _
  $region15: #{_lambda_.5} parent=0 // pred_check_branch
    %312 = sbr.rel (0) target = $region17
  $region16: #{_lambda_.5} parent=0 // pred_region
    _
  $region17: #{_lambda_.5} parent=0 // pred_fallthru
    _
  // Predicated region
  $region18: #{_lambda_.5} parent=0 // pred_check
    _
  $region19: #{_lambda_.5} parent=0 // pred_check_branch
    %314 = sbr.rel (0) target = $region21
  $region20: #{_lambda_.5} parent=0 // pred_region
    _
  $region21: #{_lambda_.5} parent=0 // pred_fallthru
    _

// kernel: _lambda_.6
$region0: #{_lambda_.6}
  #allocation0 [shape = 'u32[]', space=smem, size = 0x4, offset = 0x4, fixed_abs, tag = 'smem constant byte address 0x4 - core index']
  #allocation1 [shape = 'u32[144,128]{1,0:T(1,128)}', space=vmem, size = 0x12000, scoped, tag = 'internal scratch']
  %s0 = inlined_call_operand.vmem [shape: bf16[128,128], index: 0, kind: input, shape index: {}]
  %s1 = inlined_call_operand.vmem [shape: bf16[128,128], index: 1, kind: input, shape index: {}]
  %s2 = inlined_call_operand.vmem [shape: f32[1,128], index: 2, kind: input, shape index: {}]
  %s3 = inlined_call_operand.vmem [shape: f32[128,128], index: 3, kind: output, shape index: {}]
  %s4 = sld [smem:[#allocation0]]
  $region22: #{_lambda_.6} parent=0
    _
  %s6 = ssub.s32 1, %s4
  %s7 = scalar_select 0, %s6, %s4
  // Predicated region
  $region2: #{_lambda_.6} parent=0 // pred_check
    _
  $region3: #{_lambda_.6} parent=0 // pred_check_branch
    %9 = sbr.rel (0) target = $region5
  $region4: #{_lambda_.6} parent=0 // pred_region
    _
  $region5: #{_lambda_.6} parent=0 // pred_fallthru
    _
  // Predicated region
  $region6: #{_lambda_.6} parent=0 // pred_check
    _
  $region7: #{_lambda_.6} parent=0 // pred_check_branch
    %11 = sbr.rel (0) target = $region9
  $region8: #{_lambda_.6} parent=0 // pred_region
    _
  $region9: #{_lambda_.6} parent=0 // pred_fallthru
    _
  // Predicated region
  $region10: #{_lambda_.6} parent=0 // pred_check
    _
  $region11: #{_lambda_.6} parent=0 // pred_check_branch
    %13 = sbr.rel (0) target = $region13
  $region12: #{_lambda_.6} parent=0 // pred_region
    _
  $region13: #{_lambda_.6} parent=0 // pred_fallthru
    _
  %v15 = vld [vmem:[%s0] sm:$0xf]
  %v16 = vld [vmem:[%s0 + $0x4] sm:$0xf]
  %v17 = vld [vmem:[%s0 + $0x8] sm:$0xf]
  %v18 = vld [vmem:[%s0 + $0xc] sm:$0xf]
  %v19 = vld [vmem:[%s0 + $0x10] sm:$0xf]
  %v20 = vld [vmem:[%s0 + $0x14] sm:$0xf]
  %v21 = vld [vmem:[%s0 + $0x18] sm:$0xf]
  %v22 = vld [vmem:[%s0 + $0x1c] sm:$0xf]
  %v23 = vld [vmem:[%s0 + $0x20] sm:$0xf]
  %v24 = vld [vmem:[%s0 + $0x24] sm:$0xf]
  %v25 = vld [vmem:[%s0 + $0x28] sm:$0xf]
  %v26 = vld [vmem:[%s0 + $0x2c] sm:$0xf]
  %v27 = vld [vmem:[%s0 + $0x30] sm:$0xf]
  %v28 = vld [vmem:[%s0 + $0x34] sm:$0xf]
  %v29 = vld [vmem:[%s0 + $0x38] sm:$0xf]
  %v30 = vld [vmem:[%s0 + $0x3c] sm:$0xf]
  %v31 = vld [vmem:[%s1] sm:$0xf]
  %v32 = vld [vmem:[%s1 + $0x4] sm:$0xf]
  %v33 = vld [vmem:[%s1 + $0x8] sm:$0xf]
  %v34 = vld [vmem:[%s1 + $0xc] sm:$0xf]
  %v35 = vld [vmem:[%s1 + $0x10] sm:$0xf]
  %v36 = vld [vmem:[%s1 + $0x14] sm:$0xf]
  %v37 = vld [vmem:[%s1 + $0x18] sm:$0xf]
  %v38 = vld [vmem:[%s1 + $0x1c] sm:$0xf]
  %v39 = vld [vmem:[%s1 + $0x20] sm:$0xf]
  %v40 = vld [vmem:[%s1 + $0x24] sm:$0xf]
  %v41 = vld [vmem:[%s1 + $0x28] sm:$0xf]
  %v42 = vld [vmem:[%s1 + $0x2c] sm:$0xf]
  %v43 = vld [vmem:[%s1 + $0x30] sm:$0xf]
  %v44 = vld [vmem:[%s1 + $0x34] sm:$0xf]
  %v45 = vld [vmem:[%s1 + $0x38] sm:$0xf]
  %v46 = vld [vmem:[%s1 + $0x3c] sm:$0xf]
  %v47 = vld [vmem:[%s2] sm:$0x1]
  %v49 = vlaneseq
  %v50 = vshrl.u32 %v49, 7
  %v51 = vsub.s32 0, %v50
  %v52 = vrot.slane %v47, %v51
  %v70 = vunpack.c.l.b16 %v15
  %v71 = vunpack.c.l.b16 %v16
  %v72 = vunpack.c.l.b16 %v17
  %v73 = vunpack.c.l.b16 %v18
  %v74 = vunpack.c.l.b16 %v19
  %v75 = vunpack.c.l.b16 %v20
  %v76 = vunpack.c.l.b16 %v21
  %v77 = vunpack.c.l.b16 %v22
  %v78 = vunpack.c.l.b16 %v23
  %v79 = vunpack.c.l.b16 %v24
  %v80 = vunpack.c.l.b16 %v25
  %v81 = vunpack.c.l.b16 %v26
  %v82 = vunpack.c.l.b16 %v27
  %v83 = vunpack.c.l.b16 %v28
  %v84 = vunpack.c.l.b16 %v29
  %v85 = vunpack.c.l.b16 %v30
  %v86 = vpack.c.b16 %v71, %v70
  %v87 = vpack.c.b16 %v73, %v72
  %v88 = vpack.c.b16 %v75, %v74
  %v89 = vpack.c.b16 %v77, %v76
  %v90 = vpack.c.b16 %v79, %v78
  %v91 = vpack.c.b16 %v81, %v80
  %v92 = vpack.c.b16 %v83, %v82
  %v93 = vpack.c.b16 %v85, %v84
  %v118 = vunpack.c.l.b16 %v31
  %v119 = vunpack.c.l.b16 %v32
  %v120 = vunpack.c.l.b16 %v33
  %v121 = vunpack.c.l.b16 %v34
  %v122 = vunpack.c.l.b16 %v35
  %v123 = vunpack.c.l.b16 %v36
  %v124 = vunpack.c.l.b16 %v37
  %v125 = vunpack.c.l.b16 %v38
  %v126 = vunpack.c.l.b16 %v39
  %v127 = vunpack.c.l.b16 %v40
  %v128 = vunpack.c.l.b16 %v41
  %v129 = vunpack.c.l.b16 %v42
  %v130 = vunpack.c.l.b16 %v43
  %v131 = vunpack.c.l.b16 %v44
  %v132 = vunpack.c.l.b16 %v45
  %v133 = vunpack.c.l.b16 %v46
  %v134 = vpack.c.b16 %v119, %v118
  %v135 = vpack.c.b16 %v121, %v120
  %v136 = vpack.c.b16 %v123, %v122
  %v137 = vpack.c.b16 %v125, %v124
  %v138 = vpack.c.b16 %v127, %v126
  %v139 = vpack.c.b16 %v129, %v128
  %v140 = vpack.c.b16 %v131, %v130
  %v141 = vpack.c.b16 %v133, %v132
  %150 = vmatprep.subr.bf16.mxu0 0
  %151 = vmatpush1.bf16.msra.mxu0 %v134
  %152 = vmatprep.subr.bf16.mxu0 0
  %153 = vmatpush1.bf16.msra.mxu0 %v135
  %154 = vmatprep.subr.bf16.mxu0 0
  %155 = vmatpush1.bf16.msra.mxu0 %v136
  %156 = vmatprep.subr.bf16.mxu0 0
  %157 = vmatpush1.bf16.msra.mxu0 %v137
  %158 = vmatprep.subr.bf16.mxu0 0
  %159 = vmatpush1.bf16.msra.mxu0 %v138
  %160 = vmatprep.subr.bf16.mxu0 0
  %161 = vmatpush1.bf16.msra.mxu0 %v139
  %162 = vmatprep.subr.bf16.mxu0 0
  %163 = vmatpush1.bf16.msra.mxu0 %v140
  %164 = vmatprep.subr.bf16.mxu0 0
  %165 = vmatpush1.bf16.msra.mxu0 %v141
  %166 = vmatprep.subr.bf16.mxu0 0
  %167 = vmatpush1.bf16.msra.mxu0 0
  %168 = vmatprep.subr.bf16.mxu0 0
  %169 = vmatpush1.bf16.msra.mxu0 0
  %170 = vmatprep.subr.bf16.mxu0 0
  %171 = vmatpush1.bf16.msra.mxu0 0
  %172 = vmatprep.subr.bf16.mxu0 0
  %173 = vmatpush1.bf16.msra.mxu0 0
  %174 = vmatprep.subr.bf16.mxu0 0
  %175 = vmatpush1.bf16.msra.mxu0 0
  %176 = vmatprep.subr.bf16.mxu0 0
  %177 = vmatpush1.bf16.msra.mxu0 0
  %178 = vmatprep.subr.bf16.mxu0 0
  %179 = vmatpush1.bf16.msra.mxu0 0
  %180 = vmatprep.subr.bf16.mxu0 0
  %181 = vmatpush1.bf16.msra.mxu0 0
  %182 = vmatprep.mubr.bf16.mxu0 0
  %183 = vmatmul.mubr.bf16.gmra.mrb[0].mxu0 %v86
  %v184 = vpop.f32.mrb[0].mxu0
  %v185 = vadd.f32 %v52, %v184
  %v186 = vpop.f32.mrb[0].mxu0
  %v187 = vpop.f32.mrb[0].mxu0
  %v188 = vadd.f32 %v52, %v187
  %v189 = vpop.f32.mrb[0].mxu0
  %190 = vmatprep.mubr.bf16.mxu0 0
  %191 = vmatmul.mubr.bf16.gmra.mrb[0].mxu0 %v87
  %v192 = vpop.f32.mrb[0].mxu0
  %v193 = vadd.f32 %v52, %v192
  %v194 = vpop.f32.mrb[0].mxu0
  %v195 = vpop.f32.mrb[0].mxu0
  %v196 = vadd.f32 %v52, %v195
  %v197 = vpop.f32.mrb[0].mxu0
  %198 = vmatprep.mubr.bf16.mxu0 0
  %199 = vmatmul.mubr.bf16.gmra.mrb[0].mxu0 %v88
  %v200 = vpop.f32.mrb[0].mxu0
  %v201 = vadd.f32 %v52, %v200
  %v202 = vpop.f32.mrb[0].mxu0
  %v203 = vpop.f32.mrb[0].mxu0
  %v204 = vadd.f32 %v52, %v203
  %v205 = vpop.f32.mrb[0].mxu0
  %206 = vmatprep.mubr.bf16.mxu0 0
  %207 = vmatmul.mubr.bf16.gmra.mrb[0].mxu0 %v89
  %v208 = vpop.f32.mrb[0].mxu0
  %v209 = vadd.f32 %v52, %v208
  %v210 = vpop.f32.mrb[0].mxu0
  %v211 = vpop.f32.mrb[0].mxu0
  %v212 = vadd.f32 %v52, %v211
  %v213 = vpop.f32.mrb[0].mxu0
  %214 = vmatprep.mubr.bf16.mxu0 0
  %215 = vmatmul.mubr.bf16.gmra.mrb[0].mxu0 %v90
  %v216 = vpop.f32.mrb[0].mxu0
  %v217 = vadd.f32 %v52, %v216
  %v218 = vpop.f32.mrb[0].mxu0
  %v219 = vpop.f32.mrb[0].mxu0
  %v220 = vadd.f32 %v52, %v219
  %v221 = vpop.f32.mrb[0].mxu0
  %222 = vmatprep.mubr.bf16.mxu0 0
  %223 = vmatmul.mubr.bf16.gmra.mrb[0].mxu0 %v91
  %v224 = vpop.f32.mrb[0].mxu0
  %v225 = vadd.f32 %v52, %v224
  %v226 = vpop.f32.mrb[0].mxu0
  %v227 = vpop.f32.mrb[0].mxu0
  %v228 = vadd.f32 %v52, %v227
  %v229 = vpop.f32.mrb[0].mxu0
  %230 = vmatprep.mubr.bf16.mxu0 0
  %231 = vmatmul.mubr.bf16.gmra.mrb[0].mxu0 %v92
  %v232 = vpop.f32.mrb[0].mxu0
  %v233 = vadd.f32 %v52, %v232
  %v234 = vpop.f32.mrb[0].mxu0
  %v235 = vpop.f32.mrb[0].mxu0
  %v236 = vadd.f32 %v52, %v235
  %v237 = vpop.f32.mrb[0].mxu0
  %238 = vmatprep.mubr.bf16.mxu0 0
  %239 = vmatmul.mubr.bf16.gmra.mrb[0].mxu0 %v93
  %v240 = vpop.f32.mrb[0].mxu0
  %v241 = vadd.f32 %v52, %v240
  %v242 = vpop.f32.mrb[0].mxu0
  %v243 = vpop.f32.mrb[0].mxu0
  %v244 = vadd.f32 %v52, %v243
  %v245 = vpop.f32.mrb[0].mxu0
  %246 = vdwg.mxu0
  %247 = vst [vmem:[%s3] sm:$0xff] %v185
  %248 = vst [vmem:[%s3 + $0x8] sm:$0xff] %v188
  %249 = vst [vmem:[%s3 + $0x10] sm:$0xff] %v193
  %250 = vst [vmem:[%s3 + $0x18] sm:$0xff] %v196
  %251 = vst [vmem:[%s3 + $0x20] sm:$0xff] %v201
  %252 = vst [vmem:[%s3 + $0x28] sm:$0xff] %v204
  %253 = vst [vmem:[%s3 + $0x30] sm:$0xff] %v209
  %254 = vst [vmem:[%s3 + $0x38] sm:$0xff] %v212
  %255 = vst [vmem:[%s3 + $0x40] sm:$0xff] %v217
  %256 = vst [vmem:[%s3 + $0x48] sm:$0xff] %v220
  %257 = vst [vmem:[%s3 + $0x50] sm:$0xff] %v225
  %258 = vst [vmem:[%s3 + $0x58] sm:$0xff] %v228
  %259 = vst [vmem:[%s3 + $0x60] sm:$0xff] %v233
  %260 = vst [vmem:[%s3 + $0x68] sm:$0xff] %v236
  %261 = vst [vmem:[%s3 + $0x70] sm:$0xff] %v241
  %262 = vst [vmem:[%s3 + $0x78] sm:$0xff] %v244
  // Predicated region
  $region14: #{_lambda_.6} parent=0 // pred_check
    _
  $region15: #{_lambda_.6} parent=0 // pred_check_branch
    %264 = sbr.rel (0) target = $region17
  $region16: #{_lambda_.6} parent=0 // pred_region
    _
  $region17: #{_lambda_.6} parent=0 // pred_fallthru
    _
  // Predicated region
  $region18: #{_lambda_.6} parent=0 // pred_check
    _
  $region19: #{_lambda_.6} parent=0 // pred_check_branch
    %266 = sbr.rel (0) target = $region21
  $region20: #{_lambda_.6} parent=0 // pred_region
    _
  $region21: #{_lambda_.6} parent=0 // pred_fallthru
    _

// kernel: _lambda_.8
$region0: #{_lambda_.8}
  #allocation0 [shape = 'u32[]', space=smem, size = 0x4, offset = 0x4, fixed_abs, tag = 'smem constant byte address 0x4 - core index']
  #allocation1 [shape = 'u32[144,128]{1,0:T(1,128)}', space=vmem, size = 0x12000, scoped, tag = 'internal scratch']
  %s0 = inlined_call_operand.vmem [shape: bf16[512,128], index: 0, kind: input, shape index: {}]
  %s1 = inlined_call_operand.vmem [shape: bf16[128,128], index: 1, kind: input, shape index: {}]
  %s2 = inlined_call_operand.vmem [shape: f32[1,128], index: 2, kind: input, shape index: {}]
  %s3 = inlined_call_operand.vmem [shape: f32[512,128], index: 3, kind: output, shape index: {}]
  %s4 = sld [smem:[#allocation0]]
  $region22: #{_lambda_.8} parent=0
    _
  %s6 = ssub.s32 1, %s4
  %s7 = scalar_select 0, %s6, %s4
  // Predicated region
  $region2: #{_lambda_.8} parent=0 // pred_check
    _
  $region3: #{_lambda_.8} parent=0 // pred_check_branch
    %9 = sbr.rel (0) target = $region5
  $region4: #{_lambda_.8} parent=0 // pred_region
    _
  $region5: #{_lambda_.8} parent=0 // pred_fallthru
    _
  // Predicated region
  $region6: #{_lambda_.8} parent=0 // pred_check
    _
  $region7: #{_lambda_.8} parent=0 // pred_check_branch
    %11 = sbr.rel (0) target = $region9
  $region8: #{_lambda_.8} parent=0 // pred_region
    _
  $region9: #{_lambda_.8} parent=0 // pred_fallthru
    _
  // Predicated region
  $region10: #{_lambda_.8} parent=0 // pred_check
    _
  $region11: #{_lambda_.8} parent=0 // pred_check_branch
    %13 = sbr.rel (0) target = $region13
  $region12: #{_lambda_.8} parent=0 // pred_region
    _
  $region13: #{_lambda_.8} parent=0 // pred_fallthru
    _
  %v15 = vld [vmem:[%s0] sm:$0xf]
  %v16 = vld [vmem:[%s0 + $0x4] sm:$0xf]
  %v17 = vld [vmem:[%s0 + $0x8] sm:$0xf]
  %v18 = vld [vmem:[%s0 + $0xc] sm:$0xf]
  %v19 = vld [vmem:[%s0 + $0x10] sm:$0xf]
  %v20 = vld [vmem:[%s0 + $0x14] sm:$0xf]
  %v21 = vld [vmem:[%s0 + $0x18] sm:$0xf]
  %v22 = vld [vmem:[%s0 + $0x1c] sm:$0xf]
  %v23 = vld [vmem:[%s0 + $0x20] sm:$0xf]
  %v24 = vld [vmem:[%s0 + $0x24] sm:$0xf]
  %v25 = vld [vmem:[%s0 + $0x28] sm:$0xf]
  %v26 = vld [vmem:[%s0 + $0x2c] sm:$0xf]
  %v27 = vld [vmem:[%s0 + $0x30] sm:$0xf]
  %v28 = vld [vmem:[%s0 + $0x34] sm:$0xf]
  %v29 = vld [vmem:[%s0 + $0x38] sm:$0xf]
  %v30 = vld [vmem:[%s0 + $0x3c] sm:$0xf]
  %v31 = vld [vmem:[%s0 + $0x40] sm:$0xf]
  %v32 = vld [vmem:[%s0 + $0x44] sm:$0xf]
  %v33 = vld [vmem:[%s0 + $0x48] sm:$0xf]
  %v34 = vld [vmem:[%s0 + $0x4c] sm:$0xf]
  %v35 = vld [vmem:[%s0 + $0x50] sm:$0xf]
  %v36 = vld [vmem:[%s0 + $0x54] sm:$0xf]
  %v37 = vld [vmem:[%s0 + $0x58] sm:$0xf]
  %v38 = vld [vmem:[%s0 + $0x5c] sm:$0xf]
  %v39 = vld [vmem:[%s0 + $0x60] sm:$0xf]
  %v40 = vld [vmem:[%s0 + $0x64] sm:$0xf]
  %v41 = vld [vmem:[%s0 + $0x68] sm:$0xf]
  %v42 = vld [vmem:[%s0 + $0x6c] sm:$0xf]
  %v43 = vld [vmem:[%s0 + $0x70] sm:$0xf]
  %v44 = vld [vmem:[%s0 + $0x74] sm:$0xf]
  %v45 = vld [vmem:[%s0 + $0x78] sm:$0xf]
  %v46 = vld [vmem:[%s0 + $0x7c] sm:$0xf]
  %v47 = vld [vmem:[%s0 + $0x80] sm:$0xf]
  %v48 = vld [vmem:[%s0 + $0x84] sm:$0xf]
  %v49 = vld [vmem:[%s0 + $0x88] sm:$0xf]
  %v50 = vld [vmem:[%s0 + $0x8c] sm:$0xf]
  %v51 = vld [vmem:[%s0 + $0x90] sm:$0xf]
  %v52 = vld [vmem:[%s0 + $0x94] sm:$0xf]
  %v53 = vld [vmem:[%s0 + $0x98] sm:$0xf]
  %v54 = vld [vmem:[%s0 + $0x9c] sm:$0xf]
  %v55 = vld [vmem:[%s0 + $0xa0] sm:$0xf]
  %v56 = vld [vmem:[%s0 + $0xa4] sm:$0xf]
  %v57 = vld [vmem:[%s0 + $0xa8] sm:$0xf]
  %v58 = vld [vmem:[%s0 + $0xac] sm:$0xf]
  %v59 = vld [vmem:[%s0 + $0xb0] sm:$0xf]
  %v60 = vld [vmem:[%s0 + $0xb4] sm:$0xf]
  %v61 = vld [vmem:[%s0 + $0xb8] sm:$0xf]
  %v62 = vld [vmem:[%s0 + $0xbc] sm:$0xf]
  %v63 = vld [vmem:[%s0 + $0xc0] sm:$0xf]
  %v64 = vld [vmem:[%s0 + $0xc4] sm:$0xf]
  %v65 = vld [vmem:[%s0 + $0xc8] sm:$0xf]
  %v66 = vld [vmem:[%s0 + $0xcc] sm:$0xf]
  %v67 = vld [vmem:[%s0 + $0xd0] sm:$0xf]
  %v68 = vld [vmem:[%s0 + $0xd4] sm:$0xf]
  %v69 = vld [vmem:[%s0 + $0xd8] sm:$0xf]
  %v70 = vld [vmem:[%s0 + $0xdc] sm:$0xf]
  %v71 = vld [vmem:[%s0 + $0xe0] sm:$0xf]
  %v72 = vld [vmem:[%s0 + $0xe4] sm:$0xf]
  %v73 = vld [vmem:[%s0 + $0xe8] sm:$0xf]
  %v74 = vld [vmem:[%s0 + $0xec] sm:$0xf]
  %v75 = vld [vmem:[%s0 + $0xf0] sm:$0xf]
  %v76 = vld [vmem:[%s0 + $0xf4] sm:$0xf]
  %v77 = vld [vmem:[%s0 + $0xf8] sm:$0xf]
  %v78 = vld [vmem:[%s0 + $0xfc] sm:$0xf]
  %v79 = vld [vmem:[%s1] sm:$0xf]
  %v80 = vld [vmem:[%s1 + $0x4] sm:$0xf]
  %v81 = vld [vmem:[%s1 + $0x8] sm:$0xf]
  %v82 = vld [vmem:[%s1 + $0xc] sm:$0xf]
  %v83 = vld [vmem:[%s1 + $0x10] sm:$0xf]
  %v84 = vld [vmem:[%s1 + $0x14] sm:$0xf]
  %v85 = vld [vmem:[%s1 + $0x18] sm:$0xf]
  %v86 = vld [vmem:[%s1 + $0x1c] sm:$0xf]
  %v87 = vld [vmem:[%s1 + $0x20] sm:$0xf]
  %v88 = vld [vmem:[%s1 + $0x24] sm:$0xf]
  %v89 = vld [vmem:[%s1 + $0x28] sm:$0xf]
  %v90 = vld [vmem:[%s1 + $0x2c] sm:$0xf]
  %v91 = vld [vmem:[%s1 + $0x30] sm:$0xf]
  %v92 = vld [vmem:[%s1 + $0x34] sm:$0xf]
  %v93 = vld [vmem:[%s1 + $0x38] sm:$0xf]
  %v94 = vld [vmem:[%s1 + $0x3c] sm:$0xf]
  %v95 = vld [vmem:[%s2] sm:$0x1]
  %v97 = vlaneseq
  %v98 = vshrl.u32 %v97, 7
  %v99 = vsub.s32 0, %v98
  %v100 = vrot.slane %v95, %v99
  %v166 = vunpack.c.l.b16 %v15
  %v167 = vunpack.c.l.b16 %v16
  %v168 = vunpack.c.l.b16 %v17
  %v169 = vunpack.c.l.b16 %v18
  %v170 = vunpack.c.l.b16 %v19
  %v171 = vunpack.c.l.b16 %v20
  %v172 = vunpack.c.l.b16 %v21
  %v173 = vunpack.c.l.b16 %v22
  %v174 = vunpack.c.l.b16 %v23
  %v175 = vunpack.c.l.b16 %v24
  %v176 = vunpack.c.l.b16 %v25
  %v177 = vunpack.c.l.b16 %v26
  %v178 = vunpack.c.l.b16 %v27
  %v179 = vunpack.c.l.b16 %v28
  %v180 = vunpack.c.l.b16 %v29
  %v181 = vunpack.c.l.b16 %v30
  %v182 = vunpack.c.l.b16 %v31
  %v183 = vunpack.c.l.b16 %v32
  %v184 = vunpack.c.l.b16 %v33
  %v185 = vunpack.c.l.b16 %v34
  %v186 = vunpack.c.l.b16 %v35
  %v187 = vunpack.c.l.b16 %v36
  %v188 = vunpack.c.l.b16 %v37
  %v189 = vunpack.c.l.b16 %v38
  %v190 = vunpack.c.l.b16 %v39
  %v191 = vunpack.c.l.b16 %v40
  %v192 = vunpack.c.l.b16 %v41
  %v193 = vunpack.c.l.b16 %v42
  %v194 = vunpack.c.l.b16 %v43
  %v195 = vunpack.c.l.b16 %v44
  %v196 = vunpack.c.l.b16 %v45
  %v197 = vunpack.c.l.b16 %v46
  %v198 = vunpack.c.l.b16 %v47
  %v199 = vunpack.c.l.b16 %v48
  %v200 = vunpack.c.l.b16 %v49
  %v201 = vunpack.c.l.b16 %v50
  %v202 = vunpack.c.l.b16 %v51
  %v203 = vunpack.c.l.b16 %v52
  %v204 = vunpack.c.l.b16 %v53
  %v205 = vunpack.c.l.b16 %v54
  %v206 = vunpack.c.l.b16 %v55
  %v207 = vunpack.c.l.b16 %v56
  %v208 = vunpack.c.l.b16 %v57
  %v209 = vunpack.c.l.b16 %v58
  %v210 = vunpack.c.l.b16 %v59
  %v211 = vunpack.c.l.b16 %v60
  %v212 = vunpack.c.l.b16 %v61
  %v213 = vunpack.c.l.b16 %v62
  %v214 = vunpack.c.l.b16 %v63
  %v215 = vunpack.c.l.b16 %v64
  %v216 = vunpack.c.l.b16 %v65
  %v217 = vunpack.c.l.b16 %v66
  %v218 = vunpack.c.l.b16 %v67
  %v219 = vunpack.c.l.b16 %v68
  %v220 = vunpack.c.l.b16 %v69
  %v221 = vunpack.c.l.b16 %v70
  %v222 = vunpack.c.l.b16 %v71
  %v223 = vunpack.c.l.b16 %v72
  %v224 = vunpack.c.l.b16 %v73
  %v225 = vunpack.c.l.b16 %v74
  %v226 = vunpack.c.l.b16 %v75
  %v227 = vunpack.c.l.b16 %v76
  %v228 = vunpack.c.l.b16 %v77
  %v229 = vunpack.c.l.b16 %v78
  %v230 = vpack.c.b16 %v167, %v166
  %v231 = vpack.c.b16 %v169, %v168
  %v232 = vpack.c.b16 %v171, %v170
  %v233 = vpack.c.b16 %v173, %v172
  %v234 = vpack.c.b16 %v175, %v174
  %v235 = vpack.c.b16 %v177, %v176
  %v236 = vpack.c.b16 %v179, %v178
  %v237 = vpack.c.b16 %v181, %v180
  %v238 = vpack.c.b16 %v183, %v182
  %v239 = vpack.c.b16 %v185, %v184
  %v240 = vpack.c.b16 %v187, %v186
  %v241 = vpack.c.b16 %v189, %v188
  %v242 = vpack.c.b16 %v191, %v190
  %v243 = vpack.c.b16 %v193, %v192
  %v244 = vpack.c.b16 %v195, %v194
  %v245 = vpack.c.b16 %v197, %v196
  %v246 = vpack.c.b16 %v199, %v198
  %v247 = vpack.c.b16 %v201, %v200
  %v248 = vpack.c.b16 %v203, %v202
  %v249 = vpack.c.b16 %v205, %v204
  %v250 = vpack.c.b16 %v207, %v206
  %v251 = vpack.c.b16 %v209, %v208
  %v252 = vpack.c.b16 %v211, %v210
  %v253 = vpack.c.b16 %v213, %v212
  %v254 = vpack.c.b16 %v215, %v214
  %v255 = vpack.c.b16 %v217, %v216
  %v256 = vpack.c.b16 %v219, %v218
  %v257 = vpack.c.b16 %v221, %v220
  %v258 = vpack.c.b16 %v223, %v222
  %v259 = vpack.c.b16 %v225, %v224
  %v260 = vpack.c.b16 %v227, %v226
  %v261 = vpack.c.b16 %v229, %v228
  %v310 = vunpack.c.l.b16 %v79
  %v311 = vunpack.c.l.b16 %v80
  %v312 = vunpack.c.l.b16 %v81
  %v313 = vunpack.c.l.b16 %v82
  %v314 = vunpack.c.l.b16 %v83
  %v315 = vunpack.c.l.b16 %v84
  %v316 = vunpack.c.l.b16 %v85
  %v317 = vunpack.c.l.b16 %v86
  %v318 = vunpack.c.l.b16 %v87
  %v319 = vunpack.c.l.b16 %v88
  %v320 = vunpack.c.l.b16 %v89
  %v321 = vunpack.c.l.b16 %v90
  %v322 = vunpack.c.l.b16 %v91
  %v323 = vunpack.c.l.b16 %v92
  %v324 = vunpack.c.l.b16 %v93
  %v325 = vunpack.c.l.b16 %v94
  %v326 = vpack.c.b16 %v311, %v310
  %v327 = vpack.c.b16 %v313, %v312
  %v328 = vpack.c.b16 %v315, %v314
  %v329 = vpack.c.b16 %v317, %v316
  %v330 = vpack.c.b16 %v319, %v318
  %v331 = vpack.c.b16 %v321, %v320
  %v332 = vpack.c.b16 %v323, %v322
  %v333 = vpack.c.b16 %v325, %v324
  %342 = vmatprep.subr.bf16.mxu0 0
  %343 = vmatpush1.bf16.msra.mxu0 %v326
  %344 = vmatprep.subr.bf16.mxu0 0
  %345 = vmatpush1.bf16.msra.mxu0 %v327
  %346 = vmatprep.subr.bf16.mxu0 0
  %347 = vmatpush1.bf16.msra.mxu0 %v328
  %348 = vmatprep.subr.bf16.mxu0 0
  %349 = vmatpush1.bf16.msra.mxu0 %v329
  %350 = vmatprep.subr.bf16.mxu0 0
  %351 = vmatpush1.bf16.msra.mxu0 %v330
  %352 = vmatprep.subr.bf16.mxu0 0
  %353 = vmatpush1.bf16.msra.mxu0 %v331
  %354 = vmatprep.subr.bf16.mxu0 0
  %355 = vmatpush1.bf16.msra.mxu0 %v332
  %356 = vmatprep.subr.bf16.mxu0 0
  %357 = vmatpush1.bf16.msra.mxu0 %v333
  %358 = vmatprep.subr.bf16.mxu0 0
  %359 = vmatpush1.bf16.msra.mxu0 0
  %360 = vmatprep.subr.bf16.mxu0 0
  %361 = vmatpush1.bf16.msra.mxu0 0
  %362 = vmatprep.subr.bf16.mxu0 0
  %363 = vmatpush1.bf16.msra.mxu0 0
  %364 = vmatprep.subr.bf16.mxu0 0
  %365 = vmatpush1.bf16.msra.mxu0 0
  %366 = vmatprep.subr.bf16.mxu0 0
  %367 = vmatpush1.bf16.msra.mxu0 0
  %368 = vmatprep.subr.bf16.mxu0 0
  %369 = vmatpush1.bf16.msra.mxu0 0
  %370 = vmatprep.subr.bf16.mxu0 0
  %371 = vmatpush1.bf16.msra.mxu0 0
  %372 = vmatprep.subr.bf16.mxu0 0
  %373 = vmatpush1.bf16.msra.mxu0 0
  %374 = vmatprep.mubr.bf16.mxu0 0
  %375 = vmatmul.mubr.bf16.gmra.mrb[0].mxu0 %v230
  %v376 = vpop.f32.mrb[0].mxu0
  %v377 = vadd.f32 %v100, %v376
  %v378 = vpop.f32.mrb[0].mxu0
  %v379 = vpop.f32.mrb[0].mxu0
  %v380 = vadd.f32 %v100, %v379
  %v381 = vpop.f32.mrb[0].mxu0
  %382 = vmatprep.mubr.bf16.mxu0 0
  %383 = vmatmul.mubr.bf16.gmra.mrb[0].mxu0 %v231
  %v384 = vpop.f32.mrb[0].mxu0
  %v385 = vadd.f32 %v100, %v384
  %v386 = vpop.f32.mrb[0].mxu0
  %v387 = vpop.f32.mrb[0].mxu0
  %v388 = vadd.f32 %v100, %v387
  %v389 = vpop.f32.mrb[0].mxu0
  %390 = vmatprep.mubr.bf16.mxu0 0
  %391 = vmatmul.mubr.bf16.gmra.mrb[0].mxu0 %v232
  %v392 = vpop.f32.mrb[0].mxu0
  %v393 = vadd.f32 %v100, %v392
  %v394 = vpop.f32.mrb[0].mxu0
  %v395 = vpop.f32.mrb[0].mxu0
  %v396 = vadd.f32 %v100, %v395
  %v397 = vpop.f32.mrb[0].mxu0
  %398 = vmatprep.mubr.bf16.mxu0 0
  %399 = vmatmul.mubr.bf16.gmra.mrb[0].mxu0 %v233
  %v400 = vpop.f32.mrb[0].mxu0
  %v401 = vadd.f32 %v100, %v400
  %v402 = vpop.f32.mrb[0].mxu0
  %v403 = vpop.f32.mrb[0].mxu0
  %v404 = vadd.f32 %v100, %v403
  %v405 = vpop.f32.mrb[0].mxu0
  %406 = vmatprep.mubr.bf16.mxu0 0
  %407 = vmatmul.mubr.bf16.gmra.mrb[0].mxu0 %v234
  %v408 = vpop.f32.mrb[0].mxu0
  %v409 = vadd.f32 %v100, %v408
  %v410 = vpop.f32.mrb[0].mxu0
  %v411 = vpop.f32.mrb[0].mxu0
  %v412 = vadd.f32 %v100, %v411
  %v413 = vpop.f32.mrb[0].mxu0
  %414 = vmatprep.mubr.bf16.mxu0 0
  %415 = vmatmul.mubr.bf16.gmra.mrb[0].mxu0 %v235
  %v416 = vpop.f32.mrb[0].mxu0
  %v417 = vadd.f32 %v100, %v416
  %v418 = vpop.f32.mrb[0].mxu0
  %v419 = vpop.f32.mrb[0].mxu0
  %v420 = vadd.f32 %v100, %v419
  %v421 = vpop.f32.mrb[0].mxu0
  %422 = vmatprep.mubr.bf16.mxu0 0
  %423 = vmatmul.mubr.bf16.gmra.mrb[0].mxu0 %v236
  %v424 = vpop.f32.mrb[0].mxu0
  %v425 = vadd.f32 %v100, %v424
  %v426 = vpop.f32.mrb[0].mxu0
  %v427 = vpop.f32.mrb[0].mxu0
  %v428 = vadd.f32 %v100, %v427
  %v429 = vpop.f32.mrb[0].mxu0
  %430 = vmatprep.mubr.bf16.mxu0 0
  %431 = vmatmul.mubr.bf16.gmra.mrb[0].mxu0 %v237
  %v432 = vpop.f32.mrb[0].mxu0
  %v433 = vadd.f32 %v100, %v432
  %v434 = vpop.f32.mrb[0].mxu0
  %v435 = vpop.f32.mrb[0].mxu0
  %v436 = vadd.f32 %v100, %v435
  %v437 = vpop.f32.mrb[0].mxu0
  %438 = vmatprep.mubr.bf16.mxu0 0
  %439 = vmatmul.mubr.bf16.gmra.mrb[0].mxu0 %v238
  %v440 = vpop.f32.mrb[0].mxu0
  %v441 = vadd.f32 %v100, %v440
  %v442 = vpop.f32.mrb[0].mxu0
  %v443 = vpop.f32.mrb[0].mxu0
  %v444 = vadd.f32 %v100, %v443
  %v445 = vpop.f32.mrb[0].mxu0
  %446 = vmatprep.mubr.bf16.mxu0 0
  %447 = vmatmul.mubr.bf16.gmra.mrb[0].mxu0 %v239
  %v448 = vpop.f32.mrb[0].mxu0
  %v449 = vadd.f32 %v100, %v448
  %v450 = vpop.f32.mrb[0].mxu0
  %v451 = vpop.f32.mrb[0].mxu0
  %v452 = vadd.f32 %v100, %v451
  %v453 = vpop.f32.mrb[0].mxu0
  %454 = vmatprep.mubr.bf16.mxu0 0
  %455 = vmatmul.mubr.bf16.gmra.mrb[0].mxu0 %v240
  %v456 = vpop.f32.mrb[0].mxu0
  %v457 = vadd.f32 %v100, %v456
  %v458 = vpop.f32.mrb[0].mxu0
  %v459 = vpop.f32.mrb[0].mxu0
  %v460 = vadd.f32 %v100, %v459
  %v461 = vpop.f32.mrb[0].mxu0
  %462 = vmatprep.mubr.bf16.mxu0 0
  %463 = vmatmul.mubr.bf16.gmra.mrb[0].mxu0 %v241
  %v464 = vpop.f32.mrb[0].mxu0
  %v465 = vadd.f32 %v100, %v464
  %v466 = vpop.f32.mrb[0].mxu0
  %v467 = vpop.f32.mrb[0].mxu0
  %v468 = vadd.f32 %v100, %v467
  %v469 = vpop.f32.mrb[0].mxu0
  %470 = vmatprep.mubr.bf16.mxu0 0
  %471 = vmatmul.mubr.bf16.gmra.mrb[0].mxu0 %v242
  %v472 = vpop.f32.mrb[0].mxu0
  %v473 = vadd.f32 %v100, %v472
  %v474 = vpop.f32.mrb[0].mxu0
  %v475 = vpop.f32.mrb[0].mxu0
  %v476 = vadd.f32 %v100, %v475
  %v477 = vpop.f32.mrb[0].mxu0
  %478 = vmatprep.mubr.bf16.mxu0 0
  %479 = vmatmul.mubr.bf16.gmra.mrb[0].mxu0 %v243
  %v480 = vpop.f32.mrb[0].mxu0
  %v481 = vadd.f32 %v100, %v480
  %v482 = vpop.f32.mrb[0].mxu0
  %v483 = vpop.f32.mrb[0].mxu0
  %v484 = vadd.f32 %v100, %v483
  %v485 = vpop.f32.mrb[0].mxu0
  %486 = vmatprep.mubr.bf16.mxu0 0
  %487 = vmatmul.mubr.bf16.gmra.mrb[0].mxu0 %v244
  %v488 = vpop.f32.mrb[0].mxu0
  %v489 = vadd.f32 %v100, %v488
  %v490 = vpop.f32.mrb[0].mxu0
  %v491 = vpop.f32.mrb[0].mxu0
  %v492 = vadd.f32 %v100, %v491
  %v493 = vpop.f32.mrb[0].mxu0
  %494 = vmatprep.mubr.bf16.mxu0 0
  %495 = vmatmul.mubr.bf16.gmra.mrb[0].mxu0 %v245
  %v496 = vpop.f32.mrb[0].mxu0
  %v497 = vadd.f32 %v100, %v496
  %v498 = vpop.f32.mrb[0].mxu0
  %v499 = vpop.f32.mrb[0].mxu0
  %v500 = vadd.f32 %v100, %v499
  %v501 = vpop.f32.mrb[0].mxu0
  %502 = vmatprep.mubr.bf16.mxu0 0
  %503 = vmatmul.mubr.bf16.gmra.mrb[0].mxu0 %v246
  %v504 = vpop.f32.mrb[0].mxu0
  %v505 = vadd.f32 %v100, %v504
  %v506 = vpop.f32.mrb[0].mxu0
  %v507 = vpop.f32.mrb[0].mxu0
  %v508 = vadd.f32 %v100, %v507
  %v509 = vpop.f32.mrb[0].mxu0
  %510 = vmatprep.mubr.bf16.mxu0 0
  %511 = vmatmul.mubr.bf16.gmra.mrb[0].mxu0 %v247
  %v512 = vpop.f32.mrb[0].mxu0
  %v513 = vadd.f32 %v100, %v512
  %v514 = vpop.f32.mrb[0].mxu0
  %v515 = vpop.f32.mrb[0].mxu0
  %v516 = vadd.f32 %v100, %v515
  %v517 = vpop.f32.mrb[0].mxu0
  %518 = vmatprep.mubr.bf16.mxu0 0
  %519 = vmatmul.mubr.bf16.gmra.mrb[0].mxu0 %v248
  %v520 = vpop.f32.mrb[0].mxu0
  %v521 = vadd.f32 %v100, %v520
  %v522 = vpop.f32.mrb[0].mxu0
  %v523 = vpop.f32.mrb[0].mxu0
  %v524 = vadd.f32 %v100, %v523
  %v525 = vpop.f32.mrb[0].mxu0
  %526 = vmatprep.mubr.bf16.mxu0 0
  %527 = vmatmul.mubr.bf16.gmra.mrb[0].mxu0 %v249
  %v528 = vpop.f32.mrb[0].mxu0
  %v529 = vadd.f32 %v100, %v528
  %v530 = vpop.f32.mrb[0].mxu0
  %v531 = vpop.f32.mrb[0].mxu0
  %v532 = vadd.f32 %v100, %v531
  %v533 = vpop.f32.mrb[0].mxu0
  %534 = vmatprep.mubr.bf16.mxu0 0
  %535 = vmatmul.mubr.bf16.gmra.mrb[0].mxu0 %v250
  %v536 = vpop.f32.mrb[0].mxu0
  %v537 = vadd.f32 %v100, %v536
  %v538 = vpop.f32.mrb[0].mxu0
  %v539 = vpop.f32.mrb[0].mxu0
  %v540 = vadd.f32 %v100, %v539
  %v541 = vpop.f32.mrb[0].mxu0
  %542 = vmatprep.mubr.bf16.mxu0 0
  %543 = vmatmul.mubr.bf16.gmra.mrb[0].mxu0 %v251
  %v544 = vpop.f32.mrb[0].mxu0
  %v545 = vadd.f32 %v100, %v544
  %v546 = vpop.f32.mrb[0].mxu0
  %v547 = vpop.f32.mrb[0].mxu0
  %v548 = vadd.f32 %v100, %v547
  %v549 = vpop.f32.mrb[0].mxu0
  %550 = vmatprep.mubr.bf16.mxu0 0
  %551 = vmatmul.mubr.bf16.gmra.mrb[0].mxu0 %v252
  %v552 = vpop.f32.mrb[0].mxu0
  %v553 = vadd.f32 %v100, %v552
  %v554 = vpop.f32.mrb[0].mxu0
  %v555 = vpop.f32.mrb[0].mxu0
  %v556 = vadd.f32 %v100, %v555
  %v557 = vpop.f32.mrb[0].mxu0
  %558 = vmatprep.mubr.bf16.mxu0 0
  %559 = vmatmul.mubr.bf16.gmra.mrb[0].mxu0 %v253
  %v560 = vpop.f32.mrb[0].mxu0
  %v561 = vadd.f32 %v100, %v560
  %v562 = vpop.f32.mrb[0].mxu0
  %v563 = vpop.f32.mrb[0].mxu0
  %v564 = vadd.f32 %v100, %v563
  %v565 = vpop.f32.mrb[0].mxu0
  %566 = vmatprep.mubr.bf16.mxu0 0
  %567 = vmatmul.mubr.bf16.gmra.mrb[0].mxu0 %v254
  %v568 = vpop.f32.mrb[0].mxu0
  %v569 = vadd.f32 %v100, %v568
  %v570 = vpop.f32.mrb[0].mxu0
  %v571 = vpop.f32.mrb[0].mxu0
  %v572 = vadd.f32 %v100, %v571
  %v573 = vpop.f32.mrb[0].mxu0
  %574 = vmatprep.mubr.bf16.mxu0 0
  %575 = vmatmul.mubr.bf16.gmra.mrb[0].mxu0 %v255
  %v576 = vpop.f32.mrb[0].mxu0
  %v577 = vadd.f32 %v100, %v576
  %v578 = vpop.f32.mrb[0].mxu0
  %v579 = vpop.f32.mrb[0].mxu0
  %v580 = vadd.f32 %v100, %v579
  %v581 = vpop.f32.mrb[0].mxu0
  %582 = vmatprep.mubr.bf16.mxu0 0
  %583 = vmatmul.mubr.bf16.gmra.mrb[0].mxu0 %v256
  %v584 = vpop.f32.mrb[0].mxu0
  %v585 = vadd.f32 %v100, %v584
  %v586 = vpop.f32.mrb[0].mxu0
  %v587 = vpop.f32.mrb[0].mxu0
  %v588 = vadd.f32 %v100, %v587
  %v589 = vpop.f32.mrb[0].mxu0
  %590 = vmatprep.mubr.bf16.mxu0 0
  %591 = vmatmul.mubr.bf16.gmra.mrb[0].mxu0 %v257
  %v592 = vpop.f32.mrb[0].mxu0
  %v593 = vadd.f32 %v100, %v592
  %v594 = vpop.f32.mrb[0].mxu0
  %v595 = vpop.f32.mrb[0].mxu0
  %v596 = vadd.f32 %v100, %v595
  %v597 = vpop.f32.mrb[0].mxu0
  %598 = vmatprep.mubr.bf16.mxu0 0
  %599 = vmatmul.mubr.bf16.gmra.mrb[0].mxu0 %v258
  %v600 = vpop.f32.mrb[0].mxu0
  %v601 = vadd.f32 %v100, %v600
  %v602 = vpop.f32.mrb[0].mxu0
  %v603 = vpop.f32.mrb[0].mxu0
  %v604 = vadd.f32 %v100, %v603
  %v605 = vpop.f32.mrb[0].mxu0
  %606 = vmatprep.mubr.bf16.mxu0 0
  %607 = vmatmul.mubr.bf16.gmra.mrb[0].mxu0 %v259
  %v608 = vpop.f32.mrb[0].mxu0
  %v609 = vadd.f32 %v100, %v608
  %v610 = vpop.f32.mrb[0].mxu0
  %v611 = vpop.f32.mrb[0].mxu0
  %v612 = vadd.f32 %v100, %v611
  %v613 = vpop.f32.mrb[0].mxu0
  %614 = vmatprep.mubr.bf16.mxu0 0
  %615 = vmatmul.mubr.bf16.gmra.mrb[0].mxu0 %v260
  %v616 = vpop.f32.mrb[0].mxu0
  %v617 = vadd.f32 %v100, %v616
  %v618 = vpop.f32.mrb[0].mxu0
  %v619 = vpop.f32.mrb[0].mxu0
  %v620 = vadd.f32 %v100, %v619
  %v621 = vpop.f32.mrb[0].mxu0
  %622 = vmatprep.mubr.bf16.mxu0 0
  %623 = vmatmul.mubr.bf16.gmra.mrb[0].mxu0 %v261
  %v624 = vpop.f32.mrb[0].mxu0
  %v625 = vadd.f32 %v100, %v624
  %v626 = vpop.f32.mrb[0].mxu0
  %v627 = vpop.f32.mrb[0].mxu0
  %v628 = vadd.f32 %v100, %v627
  %v629 = vpop.f32.mrb[0].mxu0
  %630 = vdwg.mxu0
  %631 = vst [vmem:[%s3] sm:$0xff] %v377
  %632 = vst [vmem:[%s3 + $0x8] sm:$0xff] %v380
  %633 = vst [vmem:[%s3 + $0x10] sm:$0xff] %v385
  %634 = vst [vmem:[%s3 + $0x18] sm:$0xff] %v388
  %635 = vst [vmem:[%s3 + $0x20] sm:$0xff] %v393
  %636 = vst [vmem:[%s3 + $0x28] sm:$0xff] %v396
  %637 = vst [vmem:[%s3 + $0x30] sm:$0xff] %v401
  %638 = vst [vmem:[%s3 + $0x38] sm:$0xff] %v404
  %639 = vst [vmem:[%s3 + $0x40] sm:$0xff] %v409
  %640 = vst [vmem:[%s3 + $0x48] sm:$0xff] %v412
  %641 = vst [vmem:[%s3 + $0x50] sm:$0xff] %v417
  %642 = vst [vmem:[%s3 + $0x58] sm:$0xff] %v420
  %643 = vst [vmem:[%s3 + $0x60] sm:$0xff] %v425
  %644 = vst [vmem:[%s3 + $0x68] sm:$0xff] %v428
  %645 = vst [vmem:[%s3 + $0x70] sm:$0xff] %v433
  %646 = vst [vmem:[%s3 + $0x78] sm:$0xff] %v436
  %647 = vst [vmem:[%s3 + $0x80] sm:$0xff] %v441
  %648 = vst [vmem:[%s3 + $0x88] sm:$0xff] %v444
  %649 = vst [vmem:[%s3 + $0x90] sm:$0xff] %v449
  %650 = vst [vmem:[%s3 + $0x98] sm:$0xff] %v452
  %651 = vst [vmem:[%s3 + $0xa0] sm:$0xff] %v457
  %652 = vst [vmem:[%s3 + $0xa8] sm:$0xff] %v460
  %653 = vst [vmem:[%s3 + $0xb0] sm:$0xff] %v465
  %654 = vst [vmem:[%s3 + $0xb8] sm:$0xff] %v468
  %655 = vst [vmem:[%s3 + $0xc0] sm:$0xff] %v473
  %656 = vst [vmem:[%s3 + $0xc8] sm:$0xff] %v476
  %657 = vst [vmem:[%s3 + $0xd0] sm:$0xff] %v481
  %658 = vst [vmem:[%s3 + $0xd8] sm:$0xff] %v484
  %659 = vst [vmem:[%s3 + $0xe0] sm:$0xff] %v489
  %660 = vst [vmem:[%s3 + $0xe8] sm:$0xff] %v492
  %661 = vst [vmem:[%s3 + $0xf0] sm:$0xff] %v497
  %662 = vst [vmem:[%s3 + $0xf8] sm:$0xff] %v500
  %663 = vst [vmem:[%s3 + $0x100] sm:$0xff] %v505
  %664 = vst [vmem:[%s3 + $0x108] sm:$0xff] %v508
  %665 = vst [vmem:[%s3 + $0x110] sm:$0xff] %v513
  %666 = vst [vmem:[%s3 + $0x118] sm:$0xff] %v516
  %667 = vst [vmem:[%s3 + $0x120] sm:$0xff] %v521
  %668 = vst [vmem:[%s3 + $0x128] sm:$0xff] %v524
  %669 = vst [vmem:[%s3 + $0x130] sm:$0xff] %v529
  %670 = vst [vmem:[%s3 + $0x138] sm:$0xff] %v532
  %671 = vst [vmem:[%s3 + $0x140] sm:$0xff] %v537
  %672 = vst [vmem:[%s3 + $0x148] sm:$0xff] %v540
  %673 = vst [vmem:[%s3 + $0x150] sm:$0xff] %v545
  %674 = vst [vmem:[%s3 + $0x158] sm:$0xff] %v548
  %675 = vst [vmem:[%s3 + $0x160] sm:$0xff] %v553
  %676 = vst [vmem:[%s3 + $0x168] sm:$0xff] %v556
  %677 = vst [vmem:[%s3 + $0x170] sm:$0xff] %v561
  %678 = vst [vmem:[%s3 + $0x178] sm:$0xff] %v564
  %679 = vst [vmem:[%s3 + $0x180] sm:$0xff] %v569
  %680 = vst [vmem:[%s3 + $0x188] sm:$0xff] %v572
  %681 = vst [vmem:[%s3 + $0x190] sm:$0xff] %v577
  %682 = vst [vmem:[%s3 + $0x198] sm:$0xff] %v580
  %683 = vst [vmem:[%s3 + $0x1a0] sm:$0xff] %v585
  %684 = vst [vmem:[%s3 + $0x1a8] sm:$0xff] %v588
  %685 = vst [vmem:[%s3 + $0x1b0] sm:$0xff] %v593
  %686 = vst [vmem:[%s3 + $0x1b8] sm:$0xff] %v596
  %687 = vst [vmem:[%s3 + $0x1c0] sm:$0xff] %v601
  %688 = vst [vmem:[%s3 + $0x1c8] sm:$0xff] %v604
  %689 = vst [vmem:[%s3 + $0x1d0] sm:$0xff] %v609
  %690 = vst [vmem:[%s3 + $0x1d8] sm:$0xff] %v612
  %691 = vst [vmem:[%s3 + $0x1e0] sm:$0xff] %v617
  %692 = vst [vmem:[%s3 + $0x1e8] sm:$0xff] %v620
  %693 = vst [vmem:[%s3 + $0x1f0] sm:$0xff] %v625
  %694 = vst [vmem:[%s3 + $0x1f8] sm:$0xff] %v628
  // Predicated region
  $region14: #{_lambda_.8} parent=0 // pred_check
    _
  $region15: #{_lambda_.8} parent=0 // pred_check_branch
    %696 = sbr.rel (0) target = $region17
  $region16: #{_lambda_.8} parent=0 // pred_region
    _
  $region17: #{_lambda_.8} parent=0 // pred_fallthru
    _
  // Predicated region
  $region18: #{_lambda_.8} parent=0 // pred_check
    _
  $region19: #{_lambda_.8} parent=0 // pred_check_branch
    %698 = sbr.rel (0) target = $region21
  $region20: #{_lambda_.8} parent=0 // pred_region
    _
  $region21: #{_lambda_.8} parent=0 // pred_fallthru
    _

</llo_original>
